<compile_context>
chip_gen: v6e
topology: v6e:2x2x1
jax: 0.10.0
libtpu: 0.0.40
codegen_flags: <defaults>
</compile_context>

<pallas_src>
import jax
import jax.numpy as jnp
from jax.experimental import pallas as pl
from jax.experimental.pallas import tpu as pltpu

LANE = 128


def _round_up(n, m):
    return ((n + m - 1) // m) * m


def _lora_lm_head_kernel(x_ref, wa_ref, b_ref, out_ref):
    """base + scaled-LoRA logits for the last token.

    x_ref  : [B, H]        last-token hidden state (sliced in the wrapper)
    wa_ref : [H, Cp + Rp]  fused, pre-transposed [ W^T (padded) | A^T (padded) ]
    b_ref  : [Rp, Cp]      pre-transposed, pre-scaled, padded lora_B
    out_ref: [B, Cp]       float32 logits (padded classes; sliced in wrapper)
    """
    cp = out_ref.shape[1]

    # One fused MXU pass: [B, H] x [H, Cp+Rp] -> [B, Cp+Rp]
    fused = jnp.dot(x_ref[...], wa_ref[...], preferred_element_type=jnp.float32)

    base = fused[:, :cp]          # x_last @ W^T   (lane-tile-aligned slice)
    a_out = fused[:, cp:]         # x_last @ A^T   (lane-tile-aligned slice)

    # Second (tiny) MXU pass: [B, Rp] x [Rp, Cp] -> [B, Cp]; scaling already
    # folded into b_ref, so no per-element multiply and no SMEM scalar.
    lora = jnp.dot(a_out.astype(b_ref.dtype), b_ref[...],
                   preferred_element_type=jnp.float32)

    out_ref[...] = base + lora


def lora_lm_head(x, w, a, b, scaling, *, compute_dtype=jnp.float32):
    """CustomLMHead_lora.forward.

    x: [B, S, H]; w: [C, H]; a: [r, H]; b: [C, r]; scaling: python float.
    compute_dtype: operand dtype fed to the MXU (accumulation is always f32).
      float32 (default) matches the PyTorch module bit-for-bit in structure;
      bfloat16 is the recommended setting on v5e/v6e/v7x (native MXU dtype,
      half the weight DMA bytes) at a tiny accuracy cost.
    """
    B, S, H = x.shape
    C, r = b.shape
    Cp = _round_up(max(C, 1), LANE)   # lane-dense output / class dim
    Rp = _round_up(max(r, 1), LANE)   # lane-aligned LoRA rank dim

    # Last-token slice done OUTSIDE the kernel -> only [B, H] is ever DMA'd
    # into VMEM (vs. the whole [B, S, H] activation: an S-fold traffic cut).
    x_last = x[:, -1, :].astype(compute_dtype)                            # [B, H]

    # One-time weight transforms (in production, do these once at model load,
    # not per call): pre-transpose to MXU-native [K, N], fold `scaling` into
    # lora_B, fuse W and A along the output axis, zero-pad to lane width.
    f32 = jnp.float32
    w_t = jnp.zeros((H, Cp), f32).at[:, :C].set(w.astype(f32).T)          # [H, Cp]
    a_t = jnp.zeros((H, Rp), f32).at[:, :r].set(a.astype(f32).T)          # [H, Rp]
    wa = jnp.concatenate([w_t, a_t], axis=1).astype(compute_dtype)        # [H, Cp+Rp]
    b_t = (jnp.zeros((Rp, Cp), f32)
           .at[:r, :C].set(scaling * b.astype(f32).T)
           .astype(compute_dtype))                                        # [Rp, Cp]

    itemsize = jnp.dtype(compute_dtype).itemsize
    flops = 2 * B * H * (Cp + Rp) + 2 * B * Rp * Cp
    bytes_accessed = (B * H + H * (Cp + Rp) + Rp * Cp) * itemsize + B * Cp * 4

    out = pl.pallas_call(
        _lora_lm_head_kernel,
        out_shape=jax.ShapeDtypeStruct((B, Cp), jnp.float32),
        in_specs=[
            pl.BlockSpec(memory_space=pltpu.MemorySpace.VMEM),   # x_last  [B, H]
            pl.BlockSpec(memory_space=pltpu.MemorySpace.VMEM),   # fused [W^T|A^T]
            pl.BlockSpec(memory_space=pltpu.MemorySpace.VMEM),   # scaled lora_B^T
        ],
        out_specs=pl.BlockSpec(memory_space=pltpu.MemorySpace.VMEM),
        compiler_params=pltpu.CompilerParams(
            # Everything resident is tiny after the last-token slice; state
            # the bound explicitly (safe on v5e/v6e/v7x scoped/physical VMEM).
            vmem_limit_bytes=32 * 1024 * 1024,
        ),
        cost_estimate=pl.CostEstimate(
            flops=flops, transcendentals=0, bytes_accessed=bytes_accessed),
    )(x_last, wa, b_t)

    return out[:, :C]


def wrapped_model_forward(x, w, a, b, scaling, *, compute_dtype=jnp.float32):
    """WrappedModel.forward with args.lm_head=True: the model's lm_head IS the
    CustomLMHead_lora, so logits == selected_logits; output is float32."""
    return lora_lm_head(x, w, a, b, scaling, compute_dtype=compute_dtype)


if __name__ == "__main__":
    # Small, deterministic synthetic setup consistent with the module:
    # dataset = 'openbookqa' -> id_list of length 4 (A/B/C/D).
    B, S, H = 2, 8, 128       # batch, seq, hidden
    C = 4                     # len(id_list)
    r = 8                     # lora_r
    lora_alpha = 16
    scaling = lora_alpha / r  # args.lora_alpha / args.lora_r

    key = jax.random.PRNGKey(0)
    kx, kw, ka, kb = jax.random.split(key, 4)

    x = jax.random.normal(kx, (B, S, H), dtype=jnp.float32)
    # original_lm_head.weight[id_list, :]  -> [C, H]
    w = jax.random.normal(kw, (C, H), dtype=jnp.float32) * 0.02
    # lora_A['default'].weight             -> [r, H]
    a = jax.random.normal(ka, (r, H), dtype=jnp.float32) * 0.02
    # lora_B['default'].weight[id_list, :] -> [C, r]
    b = jax.random.normal(kb, (C, r), dtype=jnp.float32) * 0.02

    # Pure-JAX reference of the module's forward.
    x_last = x[:, -1, :].astype(jnp.float32)
    ref = x_last @ w.T + (x_last @ a.T) @ b.T * scaling

    # f32 path (matches PyTorch .to(float32) exactly).
    out = wrapped_model_forward(x, w, a, b, scaling)
    out = jax.block_until_ready(out)
    assert out.shape == (B, C) and out.dtype == jnp.float32
    assert jnp.allclose(out, ref, atol=1e-5, rtol=1e-5)

    # bf16-operand path (recommended on v5e/v6e/v7x; f32 MXU accumulation).
    out_bf16 = wrapped_model_forward(x, w, a, b, scaling,
                                     compute_dtype=jnp.bfloat16)
    out_bf16 = jax.block_until_ready(out_bf16)
    assert out_bf16.shape == (B, C) and out_bf16.dtype == jnp.float32
    assert jnp.allclose(out_bf16, ref, atol=5e-2, rtol=5e-2)

    print("KERNEL_OK")
</pallas_src>

<mosaic_0001>
module attributes {stable_mosaic.version = 11 : i64} {
  func.func @_lora_lm_head_kernel(%arg0: memref<2x128xf32, #tpu.memory_space<vmem>>, %arg1: memref<128x256xf32, #tpu.memory_space<vmem>>, %arg2: memref<128x128xf32, #tpu.memory_space<vmem>>, %arg3: memref<2x128xf32, #tpu.memory_space<vmem>>) attributes {dimension_semantics = [], scalar_prefetch = 0 : i64, scratch_operands = 0 : i64, tpu.core_type = #tpu.core_type<tc>} {
    %c0 = arith.constant 0 : index
    %c0_0 = arith.constant 0 : index
    %0 = vector.load %arg0[%c0, %c0_0] : memref<2x128xf32, #tpu.memory_space<vmem>>, vector<2x128xf32>
    %c0_1 = arith.constant 0 : index
    %c0_2 = arith.constant 0 : index
    %1 = vector.load %arg1[%c0_1, %c0_2] : memref<128x256xf32, #tpu.memory_space<vmem>>, vector<128x256xf32>
    %cst = arith.constant dense<0.000000e+00> : vector<2x256xf32>
    %2 = tpu.matmul %0, %1, %cst {dimension_numbers = #tpu.dot_dimension_numbers<[1], [0], [0], [1], [0, 0, 1, 1], [], []>} : vector<2x128xf32>, vector<128x256xf32>, vector<2x256xf32> -> vector<2x256xf32>
    %3 = vector.extract_strided_slice %2 {offsets = [0, 0], sizes = [2, 128], strides = [1, 1]} : vector<2x256xf32> to vector<2x128xf32>
    %4 = vector.extract_strided_slice %2 {offsets = [0, 128], sizes = [2, 128], strides = [1, 1]} : vector<2x256xf32> to vector<2x128xf32>
    %c0_3 = arith.constant 0 : index
    %c0_4 = arith.constant 0 : index
    %5 = vector.load %arg2[%c0_3, %c0_4] : memref<128x128xf32, #tpu.memory_space<vmem>>, vector<128x128xf32>
    %cst_5 = arith.constant dense<0.000000e+00> : vector<2x128xf32>
    %6 = tpu.matmul %4, %5, %cst_5 {dimension_numbers = #tpu.dot_dimension_numbers<[1], [0], [0], [1], [0, 0, 1, 1], [], []>} : vector<2x128xf32>, vector<128x128xf32>, vector<2x128xf32> -> vector<2x128xf32>
    %7 = arith.addf %3, %6 : vector<2x128xf32>
    %c0_6 = arith.constant 0 : index
    %c0_7 = arith.constant 0 : index
    %8 = vector.load %arg3[%c0_6, %c0_7] : memref<2x128xf32, #tpu.memory_space<vmem>>, vector<2x128xf32>
    tpu.vector_store %arg3[%c0_6, %c0_7], %7 {strides = array<i32>} : memref<2x128xf32, #tpu.memory_space<vmem>>, vector<2x128xf32>,
    return
  }
}

</mosaic_0001>

<llo_original>
// kernel: tpu_custom_call.1
$region0: #{tpu_custom_call.1}
  #allocation0 [shape = 'u32[]', space=smem, size = 0x4, offset = 0x4, fixed_abs, tag = 'smem constant byte address 0x4 - core index']
  #allocation1 [shape = 'u32[144,128]{1,0:T(1,128)}', space=vmem, size = 0x12000, scoped, tag = 'internal scratch']
  %s0 = inlined_call_operand.hbm [shape: f32[2,128], index: 0, kind: input, shape index: {}]
  %s1 = inlined_call_operand.hbm [shape: f32[128,256], index: 1, kind: input, shape index: {}]
  %s2 = inlined_call_operand.hbm [shape: f32[128,128], index: 2, kind: input, shape index: {}]
  %s3 = inlined_call_operand.hbm [shape: f32[2,128], index: 3, kind: output, shape index: {}]
  %s4 = sld [smem:[#allocation0]]
  $region34: #{tpu_custom_call.1} parent=0
    _
  %s6 = ssub.s32 1, %s4
  %s7 = scalar_select 0, %s6, %s4
  $region1: #{tpu_custom_call.1} parent=0
    #allocation2 [shape = 'u8[1024]{0}', space=vmem, size = 0x400, scoped, tag = 'input window, operand 0, single buffered']
    #allocation3 [shape = 's32[1]{0}', space=sflag, size = 0x4, scoped, tag = 'scoped memory for tpu_custom_call.1']
    #allocation4 [shape = 's32[1]{0}', space=sflag, size = 0x4, scoped, tag = 'scoped memory for tpu_custom_call.1']
    #allocation5 [shape = 'u8[131072]{0}', space=vmem, size = 0x20000, scoped, tag = 'input window, operand 1, single buffered']
    #allocation6 [shape = 's32[1]{0}', space=sflag, size = 0x4, scoped, tag = 'scoped memory for tpu_custom_call.1']
    #allocation7 [shape = 'u8[65536]{0}', space=vmem, size = 0x10000, scoped, tag = 'input window, operand 2, single buffered']
    #allocation8 [shape = 'u8[1024]{0}', space=vmem, size = 0x400, scoped, tag = 'output window, operand 0, single buffered']
    %8 = vsyncpa [#allocation3], 0
    %9 = vsyncpa [#allocation6], 0
    %10 = vsyncpa [#allocation4], 0
    // Predicated region
    $region2: #{tpu_custom_call.1} parent=1 // pred_check
      _
    $region3: #{tpu_custom_call.1} parent=1 // pred_check_branch
      %12 = sbr.rel (0) target = $region5
    $region4: #{tpu_custom_call.1} parent=1 // pred_region
      %s14 = ssub.s32 32, 32
      %15 = vsyncadd [#allocation3], %s14
      %s17 = sshll.u32 [#allocation2], 4
      %s18 = int_to_ptr.vmem [resolvable:$true] %s17
      %20 = dma.hbm_to_vmem [thread:$0]  %s0, 32, %s18, [#allocation3]
    $region5: #{tpu_custom_call.1} parent=1 // pred_fallthru
      _
    // Predicated region
    $region6: #{tpu_custom_call.1} parent=1 // pred_check
      _
    $region7: #{tpu_custom_call.1} parent=1 // pred_check_branch
      %22 = sbr.rel (0) target = $region9
    $region8: #{tpu_custom_call.1} parent=1 // pred_region
      %s24 = ssub.s32 4096, 4096
      %25 = vsyncadd [#allocation6], %s24
      %s26 = sshll.u32 [#allocation5], 4
      %s27 = int_to_ptr.vmem [resolvable:$true] %s26
      %32 = dma.hbm_to_vmem [thread:$0]  %s1, 4096, %s27, [#allocation6], 256, 256, 16
    $region9: #{tpu_custom_call.1} parent=1 // pred_fallthru
      _
    // Predicated region
    $region10: #{tpu_custom_call.1} parent=1 // pred_check
      _
    $region11: #{tpu_custom_call.1} parent=1 // pred_check_branch
      %34 = sbr.rel (0) target = $region13
    $region12: #{tpu_custom_call.1} parent=1 // pred_region
      %s36 = ssub.s32 2048, 2048
      %37 = vsyncadd [#allocation6], %s36
      %s38 = sshll.u32 [#allocation7], 4
      %s39 = int_to_ptr.vmem [resolvable:$true] %s38
      %44 = dma.hbm_to_vmem [thread:$0]  %s2, 2048, %s39, [#allocation6], 128, 128, 8
    $region13: #{tpu_custom_call.1} parent=1 // pred_fallthru
      _
    // Predicated region
    $region14: #{tpu_custom_call.1} parent=1 // pred_check
      _
    $region15: #{tpu_custom_call.1} parent=1 // pred_check_branch
      %46 = sbr.rel (0) target = $region17
    $region16: #{tpu_custom_call.1} parent=1 // pred_region
      %47 = dma.done [#allocation3], 32
    $region17: #{tpu_custom_call.1} parent=1 // pred_fallthru
      _
    // Predicated region
    $region18: #{tpu_custom_call.1} parent=1 // pred_check
      _
    $region19: #{tpu_custom_call.1} parent=1 // pred_check_branch
      %49 = sbr.rel (0) target = $region21
    $region20: #{tpu_custom_call.1} parent=1 // pred_region
      %50 = dma.done [#allocation6], 4096
    $region21: #{tpu_custom_call.1} parent=1 // pred_fallthru
      _
    // Predicated region
    $region22: #{tpu_custom_call.1} parent=1 // pred_check
      _
    $region23: #{tpu_custom_call.1} parent=1 // pred_check_branch
      %52 = sbr.rel (0) target = $region25
    $region24: #{tpu_custom_call.1} parent=1 // pred_region
      %53 = dma.done [#allocation6], 2048
    $region25: #{tpu_custom_call.1} parent=1 // pred_fallthru
      _
    %v54 = vld [vmem:[#allocation2] sm:$0x3]
    %v55 = vld [vmem:[#allocation5] sm:$0xff]
    %v56 = vld [vmem:[#allocation5 + $0x8] sm:$0xff]
    %v57 = vld [vmem:[#allocation5 + $0x10] sm:$0xff]
    %v58 = vld [vmem:[#allocation5 + $0x18] sm:$0xff]
    %v59 = vld [vmem:[#allocation5 + $0x20] sm:$0xff]
    %v60 = vld [vmem:[#allocation5 + $0x28] sm:$0xff]
    %v61 = vld [vmem:[#allocation5 + $0x30] sm:$0xff]
    %v62 = vld [vmem:[#allocation5 + $0x38] sm:$0xff]
    %v63 = vld [vmem:[#allocation5 + $0x40] sm:$0xff]
    %v64 = vld [vmem:[#allocation5 + $0x48] sm:$0xff]
    %v65 = vld [vmem:[#allocation5 + $0x50] sm:$0xff]
    %v66 = vld [vmem:[#allocation5 + $0x58] sm:$0xff]
    %v67 = vld [vmem:[#allocation5 + $0x60] sm:$0xff]
    %v68 = vld [vmem:[#allocation5 + $0x68] sm:$0xff]
    %v69 = vld [vmem:[#allocation5 + $0x70] sm:$0xff]
    %v70 = vld [vmem:[#allocation5 + $0x78] sm:$0xff]
    %v71 = vld [vmem:[#allocation5 + $0x80] sm:$0xff]
    %v72 = vld [vmem:[#allocation5 + $0x88] sm:$0xff]
    %v73 = vld [vmem:[#allocation5 + $0x90] sm:$0xff]
    %v74 = vld [vmem:[#allocation5 + $0x98] sm:$0xff]
    %v75 = vld [vmem:[#allocation5 + $0xa0] sm:$0xff]
    %v76 = vld [vmem:[#allocation5 + $0xa8] sm:$0xff]
    %v77 = vld [vmem:[#allocation5 + $0xb0] sm:$0xff]
    %v78 = vld [vmem:[#allocation5 + $0xb8] sm:$0xff]
    %v79 = vld [vmem:[#allocation5 + $0xc0] sm:$0xff]
    %v80 = vld [vmem:[#allocation5 + $0xc8] sm:$0xff]
    %v81 = vld [vmem:[#allocation5 + $0xd0] sm:$0xff]
    %v82 = vld [vmem:[#allocation5 + $0xd8] sm:$0xff]
    %v83 = vld [vmem:[#allocation5 + $0xe0] sm:$0xff]
    %v84 = vld [vmem:[#allocation5 + $0xe8] sm:$0xff]
    %v85 = vld [vmem:[#allocation5 + $0xf0] sm:$0xff]
    %v86 = vld [vmem:[#allocation5 + $0xf8] sm:$0xff]
    %87 = vmatprep.subr.mxu0 %v86
    %88 = vmatpush1.msra.mxu0 %v85
    %89 = vmatprep.subr.mxu0 %v84
    %90 = vmatpush1.msra.mxu0 %v83
    %91 = vmatprep.subr.mxu0 %v82
    %92 = vmatpush1.msra.mxu0 %v81
    %93 = vmatprep.subr.mxu0 %v80
    %94 = vmatpush1.msra.mxu0 %v79
    %95 = vmatprep.subr.mxu0 %v78
    %96 = vmatpush1.msra.mxu0 %v77
    %97 = vmatprep.subr.mxu0 %v76
    %98 = vmatpush1.msra.mxu0 %v75
    %99 = vmatprep.subr.mxu0 %v74
    %100 = vmatpush1.msra.mxu0 %v73
    %101 = vmatprep.subr.mxu0 %v72
    %102 = vmatpush1.msra.mxu0 %v71
    %103 = vmatprep.subr.mxu0 %v70
    %104 = vmatpush1.msra.mxu0 %v69
    %105 = vmatprep.subr.mxu0 %v68
    %106 = vmatpush1.msra.mxu0 %v67
    %107 = vmatprep.subr.mxu0 %v66
    %108 = vmatpush1.msra.mxu0 %v65
    %109 = vmatprep.subr.mxu0 %v64
    %110 = vmatpush1.msra.mxu0 %v63
    %111 = vmatprep.subr.mxu0 %v62
    %112 = vmatpush1.msra.mxu0 %v61
    %113 = vmatprep.subr.mxu0 %v60
    %114 = vmatpush1.msra.mxu0 %v59
    %115 = vmatprep.subr.mxu0 %v58
    %116 = vmatpush1.msra.mxu0 %v57
    %117 = vmatprep.subr.mxu0 %v56
    %118 = vmatpush1.msra.mxu0 %v55
    %119 = vmatprep.subr.mxu0 0.0
    %120 = vmatpush2.msra.mxu0 0.0
    %121 = vmatprep.subr.mxu0 0.0
    %122 = vmatpush2.msra.mxu0 0.0
    %123 = vmatprep.subr.mxu0 0.0
    %124 = vmatpush2.msra.mxu0 0.0
    %125 = vmatprep.subr.mxu0 0.0
    %126 = vmatpush2.msra.mxu0 0.0
    %127 = vmatprep.subr.mxu0 0.0
    %128 = vmatpush2.msra.mxu0 0.0
    %129 = vmatprep.subr.mxu0 0.0
    %130 = vmatpush2.msra.mxu0 0.0
    %131 = vmatprep.subr.mxu0 0.0
    %132 = vmatpush2.msra.mxu0 0.0
    %133 = vmatprep.subr.mxu0 0.0
    %134 = vmatpush2.msra.mxu0 0.0
    %135 = vmatprep.subr.mxu0 0.0
    %136 = vmatpush2.msra.mxu0 0.0
    %137 = vmatprep.subr.mxu0 0.0
    %138 = vmatpush2.msra.mxu0 0.0
    %139 = vmatprep.subr.mxu0 0.0
    %140 = vmatpush2.msra.mxu0 0.0
    %141 = vmatprep.subr.mxu0 0.0
    %142 = vmatpush2.msra.mxu0 0.0
    %143 = vmatprep.subr.mxu0 0.0
    %144 = vmatpush2.msra.mxu0 0.0
    %145 = vmatprep.subr.mxu0 0.0
    %146 = vmatpush2.msra.mxu0 0.0
    %147 = vmatprep.subr.mxu0 0.0
    %148 = vmatpush2.msra.mxu0 0.0
    %149 = vmatprep.subr.mxu0 0.0
    %150 = vmatpush2.msra.mxu0 0.0
    %151 = vmatprep.mubr.f32.mxu0 0.0
    %152 = vmatmul.mubr.f32.gmra.mxu0 %v54
    %v153 = vpop.f32.mrf.mxu0
    %v154 = vadd.f32 0.0, %v153
    %v155 = vpop.f32.mrf.mxu0
    %v156 = vadd.f32 0.0, %v155
    %157 = vdwg.mxu0
    %v158 = vld [vmem:[#allocation7] sm:$0xff]
    %v159 = vld [vmem:[#allocation7 + $0x8] sm:$0xff]
    %v160 = vld [vmem:[#allocation7 + $0x10] sm:$0xff]
    %v161 = vld [vmem:[#allocation7 + $0x18] sm:$0xff]
    %v162 = vld [vmem:[#allocation7 + $0x20] sm:$0xff]
    %v163 = vld [vmem:[#allocation7 + $0x28] sm:$0xff]
    %v164 = vld [vmem:[#allocation7 + $0x30] sm:$0xff]
    %v165 = vld [vmem:[#allocation7 + $0x38] sm:$0xff]
    %v166 = vld [vmem:[#allocation7 + $0x40] sm:$0xff]
    %v167 = vld [vmem:[#allocation7 + $0x48] sm:$0xff]
    %v168 = vld [vmem:[#allocation7 + $0x50] sm:$0xff]
    %v169 = vld [vmem:[#allocation7 + $0x58] sm:$0xff]
    %v170 = vld [vmem:[#allocation7 + $0x60] sm:$0xff]
    %v171 = vld [vmem:[#allocation7 + $0x68] sm:$0xff]
    %v172 = vld [vmem:[#allocation7 + $0x70] sm:$0xff]
    %v173 = vld [vmem:[#allocation7 + $0x78] sm:$0xff]
    %174 = vmatprep.subr.mxu0 0.0
    %175 = vmatpush1.msra.mxu0 %v173
    %176 = vmatprep.subr.mxu0 0.0
    %177 = vmatpush1.msra.mxu0 %v172
    %178 = vmatprep.subr.mxu0 0.0
    %179 = vmatpush1.msra.mxu0 %v171
    %180 = vmatprep.subr.mxu0 0.0
    %181 = vmatpush1.msra.mxu0 %v170
    %182 = vmatprep.subr.mxu0 0.0
    %183 = vmatpush1.msra.mxu0 %v169
    %184 = vmatprep.subr.mxu0 0.0
    %185 = vmatpush1.msra.mxu0 %v168
    %186 = vmatprep.subr.mxu0 0.0
    %187 = vmatpush1.msra.mxu0 %v167
    %188 = vmatprep.subr.mxu0 0.0
    %189 = vmatpush1.msra.mxu0 %v166
    %190 = vmatprep.subr.mxu0 0.0
    %191 = vmatpush1.msra.mxu0 %v165
    %192 = vmatprep.subr.mxu0 0.0
    %193 = vmatpush1.msra.mxu0 %v164
    %194 = vmatprep.subr.mxu0 0.0
    %195 = vmatpush1.msra.mxu0 %v163
    %196 = vmatprep.subr.mxu0 0.0
    %197 = vmatpush1.msra.mxu0 %v162
    %198 = vmatprep.subr.mxu0 0.0
    %199 = vmatpush1.msra.mxu0 %v161
    %200 = vmatprep.subr.mxu0 0.0
    %201 = vmatpush1.msra.mxu0 %v160
    %202 = vmatprep.subr.mxu0 0.0
    %203 = vmatpush1.msra.mxu0 %v159
    %204 = vmatprep.subr.mxu0 0.0
    %205 = vmatpush1.msra.mxu0 %v158
    %206 = vmatprep.subr.mxu0 0.0
    %207 = vmatpush2.msra.mxu0 0.0
    %208 = vmatprep.subr.mxu0 0.0
    %209 = vmatpush2.msra.mxu0 0.0
    %210 = vmatprep.subr.mxu0 0.0
    %211 = vmatpush2.msra.mxu0 0.0
    %212 = vmatprep.subr.mxu0 0.0
    %213 = vmatpush2.msra.mxu0 0.0
    %214 = vmatprep.subr.mxu0 0.0
    %215 = vmatpush2.msra.mxu0 0.0
    %216 = vmatprep.subr.mxu0 0.0
    %217 = vmatpush2.msra.mxu0 0.0
    %218 = vmatprep.subr.mxu0 0.0
    %219 = vmatpush2.msra.mxu0 0.0
    %220 = vmatprep.subr.mxu0 0.0
    %221 = vmatpush2.msra.mxu0 0.0
    %222 = vmatprep.subr.mxu0 0.0
    %223 = vmatpush2.msra.mxu0 0.0
    %224 = vmatprep.subr.mxu0 0.0
    %225 = vmatpush2.msra.mxu0 0.0
    %226 = vmatprep.subr.mxu0 0.0
    %227 = vmatpush2.msra.mxu0 0.0
    %228 = vmatprep.subr.mxu0 0.0
    %229 = vmatpush2.msra.mxu0 0.0
    %230 = vmatprep.subr.mxu0 0.0
    %231 = vmatpush2.msra.mxu0 0.0
    %232 = vmatprep.subr.mxu0 0.0
    %233 = vmatpush2.msra.mxu0 0.0
    %234 = vmatprep.subr.mxu0 0.0
    %235 = vmatpush2.msra.mxu0 0.0
    %236 = vmatprep.subr.mxu0 0.0
    %237 = vmatpush2.msra.mxu0 0.0
    %238 = vmatprep.mubr.f32.mxu0 0.0
    %239 = vmatmul.mubr.f32.gmra.mxu0 %v156
    %v240 = vpop.f32.mrf.mxu0
    %v241 = vadd.f32 0.0, %v240
    %v242 = vpop.f32.mrf.mxu0
    %243 = vdwg.mxu0
    %v244 = vadd.f32 %v154, %v241
    %245 = vst [vmem:[#allocation8] sm:$0x3] %v244
    // Predicated region
    $region26: #{tpu_custom_call.1} parent=1 // pred_check
      _
    $region27: #{tpu_custom_call.1} parent=1 // pred_check_branch
      %247 = sbr.rel (0) target = $region29
    $region28: #{tpu_custom_call.1} parent=1 // pred_region
      %s249 = ssub.s32 32, 32
      %250 = vsyncadd [#allocation4], %s249
      %s252 = sshll.u32 [#allocation8], 4
      %s253 = int_to_ptr.vmem [resolvable:$true] %s252
      %255 = dma.vmem_to_hbm [thread:$0]  %s253, 32, %s3, [#allocation4]
    $region29: #{tpu_custom_call.1} parent=1 // pred_fallthru
      _
    // Predicated region
    $region30: #{tpu_custom_call.1} parent=1 // pred_check
      _
    $region31: #{tpu_custom_call.1} parent=1 // pred_check_branch
      %257 = sbr.rel (0) target = $region33
    $region32: #{tpu_custom_call.1} parent=1 // pred_region
      %258 = dma.done [#allocation4], 32
    $region33: #{tpu_custom_call.1} parent=1 // pred_fallthru
      _
    %259 = vsyncpa [#allocation3], 1
    %260 = vsyncpa [#allocation6], 1
    %261 = vsyncpa [#allocation4], 1

</llo_original>
